<compile_context>
chip_gen: v7x
topology: tpu7x:2x2x1
jax: 0.10.0
libtpu: 0.0.40
codegen_flags: <defaults>
</compile_context>

<pallas_src>
import jax
import jax.numpy as jnp
from jax.experimental import pallas as pl
from jax.experimental.pallas import tpu as pltpu


def _round_up(a, m):
    return (a + m - 1) // m * m


def _default_epilogue_dtype():
    """bf16 epilogues on chips with a bf16 VPU (v6e/v7x), f32 otherwise."""
    try:
        kind = jax.devices()[0].device_kind.lower()
    except Exception:
        kind = ""
    if any(v in kind for v in ("v2", "v3", "v4", "v5")):
        return jnp.float32
    return jnp.bfloat16


def _working_set_bytes(tn, f1, f2, f3, eps_bytes):
    """Rough per-grid-step VMEM footprint (bytes) for point-tile size `tn`."""
    x_tile = 2 * tn * 128 * 2                       # lane-sparse x tile (~16x raw), x2 buffers
    w_elems = 128 * f1 + f1 * f2 + f2 * f3 + (f1 + f2 + f3)
    w_bytes = 2 * 2 * w_elems                       # bf16 fc1-3 weights/biases, x2 buffers
    inter = tn * f3 * (4 + eps_bytes) + tn * (f1 + f2) * (4 + eps_bytes)
    out_b = 3 * 4 * f3                              # gmax out block (x2 buffers) + scratch
    return x_tile + w_bytes + inter + out_b


def init_params(key, num_classes=2):
    """Deterministic init matching nn.Linear shapes (stored as (in, out))."""
    dims = [(3, 64), (64, 128), (128, 1024), (1024, 512), (512, 256),
            (256, num_classes)]
    params = []
    for din, dout in dims:
        key, kw, kb = jax.random.split(key, 3)
        scale = 1.0 / jnp.sqrt(jnp.float32(din))
        w = jax.random.uniform(kw, (din, dout), jnp.float32, -scale, scale)
        b = jax.random.uniform(kb, (1, dout), jnp.float32, -scale, scale)
        params += [w, b]
    return params


def pointnet_seg(x, params, num_classes=2, tile_n=2048, n_splits=2,
                 epilogue_dtype=None):
    B, N, D = x.shape
    w1, b1, w2, b2, w3, b3, w4, b4, w5, b5, w6, b6 = params
    f1, f2, f3 = w1.shape[1], w2.shape[1], w3.shape[1]   # 64, 128, 1024

    bf16, f32 = jnp.bfloat16, jnp.float32
    eps_dt = epilogue_dtype if epilogue_dtype is not None else _default_epilogue_dtype()
    eps_bytes = jnp.dtype(eps_dt).itemsize

    DP = 8                                          # pad xyz 3 -> 8 (MXU-friendly, cheap)

    # ---- tile size: as large as the VMEM budget allows --------------------
    TN = min(_round_up(tile_n, 8), _round_up(N, 8))
    VMEM_BUDGET = 40 * 1024 * 1024                  # headroom under v7x's 64 MiB
    while TN > 512 and _working_set_bytes(TN, f1, f2, f3, eps_bytes) > VMEM_BUDGET:
        TN = _round_up(TN // 2, 8)

    # ---- split the point axis so both v7x TensorCores have work -----------
    NSPLIT = n_splits if _round_up(N, TN) // TN >= n_splits else 1
    N_pad = _round_up(N, NSPLIT * TN)
    NT_inner = (N_pad // TN) // NSPLIT

    # ---- padding: duplicate the last real point (can never win the max) ---
    xb = x.astype(bf16)
    if N_pad != N:
        xb = jnp.pad(xb, ((0, 0), (0, N_pad - N), (0, 0)), mode="edge")
    x_pad = jnp.pad(xb, ((0, 0), (0, 0), (0, DP - D)))          # (B, N_pad, 8)

    w1p = jnp.zeros((DP, f1), bf16).at[:D, :].set(w1.astype(bf16))
    weights = (w1p, b1.astype(eps_dt), w2.astype(bf16), b2.astype(eps_dt),
               w3.astype(bf16), b3.astype(eps_dt))

    def kernel(x_ref, w1r, b1r, w2r, b2r, w3r, b3r, gmax_ref, gmax_sc):
        n = pl.program_id(2)

        def layer(v_bf16, w_ref, b_ref):
            h = jnp.dot(v_bf16, w_ref[...], preferred_element_type=f32)
            # fused bias + ReLU epilogue in eps_dt (bf16 on v6e/v7x)
            return jnp.maximum(h.astype(eps_dt) + b_ref[...], 0)

        h = layer(x_ref[0], w1r, b1r)                           # (TN, 64)
        h = layer(h.astype(bf16), w2r, b2r)                     # (TN, 128)
        h = layer(h.astype(bf16), w3r, b3r)                     # (TN, 1024), >= 0

        tile_max = jnp.max(h, axis=0, keepdims=True).astype(f32)  # (1, 1024)

        @pl.when(n == 0)
        def _():
            # Zero init is valid only because fc3 output is post-ReLU (>= 0).
            gmax_sc[...] = jnp.zeros_like(gmax_sc)

        gmax_sc[...] = jnp.maximum(gmax_sc[...], tile_max)

        @pl.when(n == NT_inner - 1)
        def _():
            gmax_ref[0, 0] = gmax_sc[...]                       # lane-dense (1, 1024) store

    in_specs = [pl.BlockSpec((1, TN, DP), lambda b, s, n: (b, s * NT_inner + n, 0))]
    for p in weights:
        # constant index_map: weights stay resident in VMEM across grid steps
        in_specs.append(pl.BlockSpec(p.shape, lambda b, s, n: (0, 0)))

    vmem_limit = min(100 * 1024 * 1024,
                     max(16 * 1024 * 1024,
                         int(1.5 * _working_set_bytes(TN, f1, f2, f3, eps_bytes))))

    gmax_parts = pl.pallas_call(
        kernel,
        out_shape=jax.ShapeDtypeStruct((B, NSPLIT, 1, f3), f32),
        grid_spec=pltpu.PrefetchScalarGridSpec(
            num_scalar_prefetch=0,
            grid=(B, NSPLIT, NT_inner),
            in_specs=in_specs,
            out_specs=pl.BlockSpec((1, 1, 1, f3), lambda b, s, n: (b, s, 0, 0)),
            scratch_shapes=[pltpu.VMEM((1, f3), f32)],
        ),
        compiler_params=pltpu.CompilerParams(
            dimension_semantics=("parallel", "parallel", "arbitrary"),
            vmem_limit_bytes=vmem_limit),
    )(x_pad, *weights)

    # Combine the per-split partial maxes -> global max feature per batch elem.
    gmax = jnp.max(gmax_parts[:, :, 0, :], axis=1)              # (B, 1024) f32

    # Segmentation head (fc4-fc6) batched over B in plain f32 XLA.  Every point
    # of a batch element shares the same logits, so the repeat over N is layout.
    t = jax.nn.relu(gmax @ w4 + b4)
    t = jax.nn.relu(t @ w5 + b5)
    logits = t @ w6 + b6                                        # (B, C)
    return jnp.broadcast_to(logits[:, None, :], (B, N, num_classes))


def reference_forward(x, params):
    """Pure-JAX mirror of the PyTorch forward for correctness checking."""
    w1, b1, w2, b2, w3, b3, w4, b4, w5, b5, w6, b6 = params
    h = jax.nn.relu(x @ w1 + b1)
    h = jax.nn.relu(h @ w2 + b2)
    h = jax.nn.relu(h @ w3 + b3)
    g = jnp.max(h, axis=1, keepdims=True)
    g = jnp.broadcast_to(g, h.shape)
    h = jax.nn.relu(g @ w4 + b4)
    h = jax.nn.relu(h @ w5 + b5)
    return h @ w6 + b6


if __name__ == "__main__":
    B, N, D = 2, 44, 3
    num_classes = 2

    key = jax.random.PRNGKey(0)
    kx, kp = jax.random.split(key)
    x = jax.random.normal(kx, (B, N, D), jnp.float32)
    params = init_params(kp, num_classes=num_classes)

    # tile_n=8 + n_splits=2 exercise the multi-tile max accumulation, the
    # core-parallel point split, and duplicate-point padding (44 -> 48) even
    # at this small demo size.
    out = pointnet_seg(x, params, num_classes=num_classes, tile_n=8, n_splits=2)
    out = jax.block_until_ready(out)

    ref = reference_forward(x, params)
    assert out.shape == (B, N, num_classes)
    max_err = float(jnp.max(jnp.abs(out - ref)))
    # bf16 fc1-fc3 matmuls/epilogues vs an f32 reference -> relaxed tolerance
    # (the fc4-fc6 head runs in full f32).
    assert jnp.allclose(out, ref, atol=3e-2, rtol=3e-2), f"max abs err={max_err}"

    print("KERNEL_OK")
</pallas_src>

<mosaic_0001>
module attributes {stable_mosaic.version = 11 : i64} {
  func.func @kernel(%arg0: i32, %arg1: i32, %arg2: i32, %arg3: memref<1x8x8xbf16, #tpu.memory_space<vmem>>, %arg4: memref<8x64xbf16, #tpu.memory_space<vmem>>, %arg5: memref<1x64xbf16, #tpu.memory_space<vmem>>, %arg6: memref<64x128xbf16, #tpu.memory_space<vmem>>, %arg7: memref<1x128xbf16, #tpu.memory_space<vmem>>, %arg8: memref<128x1024xbf16, #tpu.memory_space<vmem>>, %arg9: memref<1x1024xbf16, #tpu.memory_space<vmem>>, %arg10: memref<1x1x1x1024xf32, #tpu.memory_space<vmem>>, %arg11: memref<1x1024xf32, #tpu.memory_space<vmem>>) attributes {dimension_semantics = [#tpu.dimension_semantics<parallel>, #tpu.dimension_semantics<parallel>, #tpu.dimension_semantics<arbitrary>], iteration_bounds = array<i64: 2, 2, 3>, scalar_prefetch = 0 : i64, scratch_operands = 1 : i64, tpu.core_type = #tpu.core_type<tc>, window_params = [{transform_indices = @transform_0, window_bounds = array<i64: 1, 8, 8>}, {pipeline_mode = #tpu.pipeline_mode<synchronous>, transform_indices = @transform_1, window_bounds = array<i64: 8, 64>}, {pipeline_mode = #tpu.pipeline_mode<synchronous>, transform_indices = @transform_2, window_bounds = array<i64: 1, 64>}, {pipeline_mode = #tpu.pipeline_mode<synchronous>, transform_indices = @transform_3, window_bounds = array<i64: 64, 128>}, {pipeline_mode = #tpu.pipeline_mode<synchronous>, transform_indices = @transform_4, window_bounds = array<i64: 1, 128>}, {pipeline_mode = #tpu.pipeline_mode<synchronous>, transform_indices = @transform_5, window_bounds = array<i64: 128, 1024>}, {pipeline_mode = #tpu.pipeline_mode<synchronous>, transform_indices = @transform_6, window_bounds = array<i64: 1, 1024>}, {transform_indices = @transform_7, window_bounds = array<i64: 1, 1, 1, 1024>}]} {
    %c0 = arith.constant 0 : index
    %c0_0 = arith.constant 0 : index
    %c0_1 = arith.constant 0 : index
    %0 = vector.load %arg3[%c0, %c0_0, %c0_1] : memref<1x8x8xbf16, #tpu.memory_space<vmem>>, vector<1x8x8xbf16>
    %1 = vector.shape_cast %0 : vector<1x8x8xbf16> to vector<8x8xbf16>
    %c0_2 = arith.constant 0 : index
    %c0_3 = arith.constant 0 : index
    %2 = vector.load %arg4[%c0_2, %c0_3] : memref<8x64xbf16, #tpu.memory_space<vmem>>, vector<8x64xbf16>
    %cst = arith.constant dense<0.000000e+00> : vector<8x64xf32>
    %3 = tpu.matmul %1, %2, %cst {dimension_numbers = #tpu.dot_dimension_numbers<[1], [0], [0], [1], [0, 0, 1, 1], [], []>} : vector<8x8xbf16>, vector<8x64xbf16>, vector<8x64xf32> -> vector<8x64xf32>
    %4 = arith.truncf %3 : vector<8x64xf32> to vector<8x64xbf16>
    %c0_4 = arith.constant 0 : index
    %c0_5 = arith.constant 0 : index
    %5 = vector.load %arg5[%c0_4, %c0_5] : memref<1x64xbf16, #tpu.memory_space<vmem>>, vector<1x64xbf16>
    %6 = vector.broadcast %5 : vector<1x64xbf16> to vector<8x64xbf16>
    %7 = arith.addf %4, %6 : vector<8x64xbf16>
    %cst_6 = arith.constant 0.000000e+00 : bf16
    %8 = vector.broadcast %cst_6 : bf16 to vector<8x64xbf16>
    %9 = arith.maximumf %7, %8 : vector<8x64xbf16>
    %c0_7 = arith.constant 0 : index
    %c0_8 = arith.constant 0 : index
    %10 = vector.load %arg6[%c0_7, %c0_8] : memref<64x128xbf16, #tpu.memory_space<vmem>>, vector<64x128xbf16>
    %cst_9 = arith.constant dense<0.000000e+00> : vector<8x128xf32>
    %11 = tpu.matmul %9, %10, %cst_9 {dimension_numbers = #tpu.dot_dimension_numbers<[1], [0], [0], [1], [0, 0, 1, 1], [], []>} : vector<8x64xbf16>, vector<64x128xbf16>, vector<8x128xf32> -> vector<8x128xf32>
    %12 = arith.truncf %11 : vector<8x128xf32> to vector<8x128xbf16>
    %c0_10 = arith.constant 0 : index
    %c0_11 = arith.constant 0 : index
    %13 = vector.load %arg7[%c0_10, %c0_11] : memref<1x128xbf16, #tpu.memory_space<vmem>>, vector<1x128xbf16>
    %14 = vector.broadcast %13 : vector<1x128xbf16> to vector<8x128xbf16>
    %15 = arith.addf %12, %14 : vector<8x128xbf16>
    %cst_12 = arith.constant 0.000000e+00 : bf16
    %16 = vector.broadcast %cst_12 : bf16 to vector<8x128xbf16>
    %17 = arith.maximumf %15, %16 : vector<8x128xbf16>
    %c0_13 = arith.constant 0 : index
    %c0_14 = arith.constant 0 : index
    %18 = vector.load %arg8[%c0_13, %c0_14] : memref<128x1024xbf16, #tpu.memory_space<vmem>>, vector<128x1024xbf16>
    %cst_15 = arith.constant dense<0.000000e+00> : vector<8x1024xf32>
    %19 = tpu.matmul %17, %18, %cst_15 {dimension_numbers = #tpu.dot_dimension_numbers<[1], [0], [0], [1], [0, 0, 1, 1], [], []>} : vector<8x128xbf16>, vector<128x1024xbf16>, vector<8x1024xf32> -> vector<8x1024xf32>
    %20 = arith.truncf %19 : vector<8x1024xf32> to vector<8x1024xbf16>
    %c0_16 = arith.constant 0 : index
    %c0_17 = arith.constant 0 : index
    %21 = vector.load %arg9[%c0_16, %c0_17] : memref<1x1024xbf16, #tpu.memory_space<vmem>>, vector<1x1024xbf16>
    %22 = vector.broadcast %21 : vector<1x1024xbf16> to vector<8x1024xbf16>
    %23 = arith.addf %20, %22 : vector<8x1024xbf16>
    %cst_18 = arith.constant 0.000000e+00 : bf16
    %24 = vector.broadcast %cst_18 : bf16 to vector<8x1024xbf16>
    %25 = arith.maximumf %23, %24 : vector<8x1024xbf16>
    %cst_19 = arith.constant dense<0xFF80> : vector<1024xbf16>
    %26 = vector.multi_reduction <maximumf>, %25, %cst_19 [0] : vector<8x1024xbf16> to vector<1024xbf16>
    %27 = vector.shape_cast %26 : vector<1024xbf16> to vector<1x1024xbf16>
    %28 = arith.extf %27 : vector<1x1024xbf16> to vector<1x1024xf32>
    %c0_i32 = arith.constant 0 : i32
    %29 = arith.cmpi eq, %arg2, %c0_i32 : i32
    %30 = arith.extui %29 : i1 to i32
    %c0_i32_20 = arith.constant 0 : i32
    %31 = arith.cmpi ne, %30, %c0_i32_20 : i32
    scf.if %31 {
      %cst_26 = arith.constant 0.000000e+00 : f32
      %38 = vector.broadcast %cst_26 : f32 to vector<1x1024xf32>
      %c0_27 = arith.constant 0 : index
      %c0_28 = arith.constant 0 : index
      %39 = vector.load %arg11[%c0_27, %c0_28] : memref<1x1024xf32, #tpu.memory_space<vmem>>, vector<1x1024xf32>
      tpu.vector_store %arg11[%c0_27, %c0_28], %38 {strides = array<i32>} : memref<1x1024xf32, #tpu.memory_space<vmem>>, vector<1x1024xf32>,
    } else {
    }
    %c0_21 = arith.constant 0 : index
    %c0_22 = arith.constant 0 : index
    %32 = vector.load %arg11[%c0_21, %c0_22] : memref<1x1024xf32, #tpu.memory_space<vmem>>, vector<1x1024xf32>
    %33 = arith.maximumf %32, %28 : vector<1x1024xf32>
    %c0_23 = arith.constant 0 : index
    %c0_24 = arith.constant 0 : index
    %34 = vector.load %arg11[%c0_23, %c0_24] : memref<1x1024xf32, #tpu.memory_space<vmem>>, vector<1x1024xf32>
    tpu.vector_store %arg11[%c0_23, %c0_24], %33 {strides = array<i32>} : memref<1x1024xf32, #tpu.memory_space<vmem>>, vector<1x1024xf32>,
    %c2_i32 = arith.constant 2 : i32
    %35 = arith.cmpi eq, %arg2, %c2_i32 : i32
    %36 = arith.extui %35 : i1 to i32
    %c0_i32_25 = arith.constant 0 : i32
    %37 = arith.cmpi ne, %36, %c0_i32_25 : i32
    scf.if %37 {
      %c0_26 = arith.constant 0 : index
      %c0_27 = arith.constant 0 : index
      %38 = vector.load %arg11[%c0_26, %c0_27] : memref<1x1024xf32, #tpu.memory_space<vmem>>, vector<1x1024xf32>
      %c0_28 = arith.constant 0 : index
      %c0_29 = arith.constant 0 : index
      %c0_30 = arith.constant 0 : index
      %c0_31 = arith.constant 0 : index
      %39 = vector.load %arg10[%c0_28, %c0_29, %c0_30, %c0_31] : memref<1x1x1x1024xf32, #tpu.memory_space<vmem>>, vector<1x1x1x1024xf32>
      %40 = vector.shape_cast %39 : vector<1x1x1x1024xf32> to vector<1x1024xf32>
      %41 = vector.shape_cast %38 : vector<1x1024xf32> to vector<1x1x1x1024xf32>
      tpu.vector_store %arg10[%c0_28, %c0_29, %c0_30, %c0_31], %41 {strides = array<i32>} : memref<1x1x1x1024xf32, #tpu.memory_space<vmem>>, vector<1x1x1x1024xf32>,
    } else {
    }
    return
  }
  func.func @transform_0(%arg0: i32, %arg1: i32, %arg2: i32) -> (i32, i32, i32) {
    %c3_i32 = arith.constant 3 : i32
    %0 = arith.muli %arg1, %c3_i32 : i32
    %1 = arith.addi %0, %arg2 : i32
    %c0_i32 = arith.constant 0 : i32
    %c0_i32_0 = arith.constant 0 : i32
    return %arg0, %1, %c0_i32 : i32, i32, i32
  }
  func.func @transform_1(%arg0: i32, %arg1: i32, %arg2: i32) -> (i32, i32) {
    %c0_i32 = arith.constant 0 : i32
    %c0_i32_0 = arith.constant 0 : i32
    %c0_i32_1 = arith.constant 0 : i32
    return %c0_i32, %c0_i32_0 : i32, i32
  }
  func.func @transform_2(%arg0: i32, %arg1: i32, %arg2: i32) -> (i32, i32) {
    %c0_i32 = arith.constant 0 : i32
    %c0_i32_0 = arith.constant 0 : i32
    %c0_i32_1 = arith.constant 0 : i32
    return %c0_i32, %c0_i32_0 : i32, i32
  }
  func.func @transform_3(%arg0: i32, %arg1: i32, %arg2: i32) -> (i32, i32) {
    %c0_i32 = arith.constant 0 : i32
    %c0_i32_0 = arith.constant 0 : i32
    %c0_i32_1 = arith.constant 0 : i32
    return %c0_i32, %c0_i32_0 : i32, i32
  }
  func.func @transform_4(%arg0: i32, %arg1: i32, %arg2: i32) -> (i32, i32) {
    %c0_i32 = arith.constant 0 : i32
    %c0_i32_0 = arith.constant 0 : i32
    %c0_i32_1 = arith.constant 0 : i32
    return %c0_i32, %c0_i32_0 : i32, i32
  }
  func.func @transform_5(%arg0: i32, %arg1: i32, %arg2: i32) -> (i32, i32) {
    %c0_i32 = arith.constant 0 : i32
    %c0_i32_0 = arith.constant 0 : i32
    %c0_i32_1 = arith.constant 0 : i32
    return %c0_i32, %c0_i32_0 : i32, i32
  }
  func.func @transform_6(%arg0: i32, %arg1: i32, %arg2: i32) -> (i32, i32) {
    %c0_i32 = arith.constant 0 : i32
    %c0_i32_0 = arith.constant 0 : i32
    %c0_i32_1 = arith.constant 0 : i32
    return %c0_i32, %c0_i32_0 : i32, i32
  }
  func.func @transform_7(%arg0: i32, %arg1: i32, %arg2: i32) -> (i32, i32, i32, i32) {
    %c0_i32 = arith.constant 0 : i32
    %c0_i32_0 = arith.constant 0 : i32
    %c0_i32_1 = arith.constant 0 : i32
    return %arg0, %arg1, %c0_i32, %c0_i32_0 : i32, i32, i32, i32
  }
}

</mosaic_0001>

<llo_original>
// kernel: tpu_custom_call.1
$region0: #{tpu_custom_call.1}
  #allocation0 [shape = 'u32[]', space=smem, size = 0x4, offset = 0x4, fixed_abs, tag = 'smem constant byte address 0x4 - core index']
  #allocation1 [shape = 'u32[144,128]{1,0:T(1,128)}', space=vmem, size = 0x12000, scoped, tag = 'internal scratch']
  #allocation2 [shape = 'f32[1,1024]{1,0:T(1,128)}', space=vmem, size = 0x1000, scoped, tag = 'scratch operand']
  %s0 = inlined_call_operand.vmem [shape: bf16[2,48,8], index: 0, kind: input, shape index: {}]
  %s1 = inlined_call_operand.vmem [shape: bf16[8,64], index: 1, kind: input, shape index: {}]
  %s2 = inlined_call_operand.vmem [shape: bf16[1,64], index: 2, kind: input, shape index: {}]
  %s3 = inlined_call_operand.vmem [shape: bf16[64,128], index: 3, kind: input, shape index: {}]
  %s4 = inlined_call_operand.vmem [shape: bf16[1,128], index: 4, kind: input, shape index: {}]
  %s5 = inlined_call_operand.hbm [shape: bf16[128,1024], index: 5, kind: input, shape index: {}]
  %s6 = inlined_call_operand.vmem [shape: bf16[1,1024], index: 6, kind: input, shape index: {}]
  %s7 = inlined_call_operand.hbm [shape: f32[2,2,1,1024], index: 7, kind: output, shape index: {}]
  %s8 = sld [smem:[#allocation0]]
  $region73: #{tpu_custom_call.1} parent=0
    _
  %s10 = ssub.s32 1, %s8
  %s11 = scalar_select 0, %s10, %s8
  $region1: #{tpu_custom_call.1} parent=0
    #allocation3 [shape = 'u8[262144]{0}', space=vmem, size = 0x40000, scoped, tag = 'input window, operand 5, single buffered']
    #allocation4 [shape = 's32[2]{0}', space=sflag, size = 0x8, scoped, tag = 'scoped memory for tpu_custom_call.1']
    #allocation5 [shape = 's32[2]{0}', space=sflag, size = 0x8, scoped, tag = 'scoped memory for tpu_custom_call.1']
    #allocation6 [shape = 'u8[8192]{0}', space=vmem, size = 0x2000, scoped, tag = 'output window, operand 0']
    %12 = vsyncpa [#allocation4], 0
    %13 = vsyncpa [#allocation5], 0
    %s14 = scalar_lea.sflag [#allocation5], 1
    %15 = vsyncpa %s14, 0
    loop: start=0, step=1, limit=14
    $region2: #{tpu_custom_call.1} parent=1 // loop_pre_header
      _
    $region3: #{tpu_custom_call.1} parent=1 // loop_header
      %s17 = sphi 0, %s21
      %p18 = scmp.ge.s32.totalorder %s17, 14
      %s24 = sphi 0, %s43
      %s25 = sphi 0, %s39
      %s26 = sphi 0, %s35
      %s27 = sphi 0, %s24
      %s28 = sphi 0, %s25
      %s29 = sphi 0, %s26
      %s30 = sphi 0, %s27
      %s31 = sphi 0, %s28
      %s32 = sphi 0, %s29
      %s52 = sphi 0, %s54
      %s55 = sphi 0, %s52
      %s56 = sphi 0, %s55
      %s72 = sphi 0, %s56
      %s76 = sphi 0, %s76
      %s78 = sphi 0, %s76
      %s79 = sphi 0, %s78
      %s93 = sphi 0, %s79
      %s97 = sphi 0, %s97
      %s99 = sphi 0, %s97
      %s100 = sphi 0, %s99
      %s114 = sphi 0, %s100
      %s118 = sphi 0, %s118
      %s120 = sphi 0, %s118
      %s121 = sphi 0, %s120
      %s135 = sphi 0, %s121
      %s139 = sphi 0, %s139
      %s141 = sphi 0, %s139
      %s142 = sphi 0, %s141
      %s156 = sphi 0, %s142
      %s160 = sphi 0, %s160
      %s162 = sphi 0, %s160
      %s163 = sphi 0, %s162
      %s177 = sphi 0, %s163
      %s181 = sphi 0, %s181
      %s183 = sphi 0, %s181
      %s184 = sphi 0, %s183
      %s198 = sphi 0, %s184
      %s206 = sphi 0, %s208
      %s209 = sphi 0, %s206
      %s210 = sphi 0, %s209
      %s226 = sphi 0, %s210
    $region4: #{tpu_custom_call.1} parent=1 // loop_header_branch
      %20 = sbr.rel (%p18) target = $region8
    $region5: #{tpu_custom_call.1} parent=1 // loop_body
      %s22 = ssub.s32 %s17, 1
      %s23 = ssub.s32 %s17, 2
      %s33 = sadd.s32 1, %s26
      %p34 = scmp.ge.s32.totalorder %s33, 3
      %s35 = scalar_select %p34, 0, %s33
      %s36 = sadd.s32 1, %s25
      %s37 = scalar_select %p34, %s36, %s25
      %p38 = scmp.ge.s32.totalorder %s37, 2
      %s39 = scalar_select %p38, 0, %s37
      %s40 = sadd.s32 1, %s24
      %s41 = scalar_select %p38, %s40, %s24
      %p42 = scmp.ge.s32.totalorder %s41, 2
      %s43 = scalar_select %p42, 0, %s41
      %s44 = smul.u32 %s25, 3
      %s45 = sadd.s32 %s44, %s26
      %s46 = smul.u32 %s39, 3
      %s47 = sadd.s32 %s46, %s35
      %s48 = ssub.s32 %s24, %s43
      %s49 = ssub.s32 %s45, %s47
      %s50 = sor.u32 %s48, %s49
      %p51 = scmp.eq.s32.totalorder %s50, 0
      %s53 = sadd.s32 %s52, 1
      %s54 = scalar_select %p51, %s52, %s53
      %p57 = pneg %p51
      %p58 = scmp.eq.s32.totalorder %s17, 11
      %p59 = por %p57, %p58
      %p60 = scmp.ne.s32.totalorder %s52, %s55
      %p61 = scmp.eq.s32.totalorder %s17, 0
      %p62 = por %p60, %p61
      %p63 = scmp.ne.s32.totalorder %s52, %s55
      %p64 = scmp.eq.s32.totalorder %s22, 11
      %p65 = por %p63, %p64
      %p66 = scmp.ne.s32.totalorder %s55, %s56
      %p67 = scmp.eq.s32.totalorder %s22, 0
      %p68 = por %p66, %p67
      %p69 = scmp.ne.s32.totalorder %s55, %s56
      %p70 = scmp.eq.s32.totalorder %s23, 11
      %p71 = por %p69, %p70
      %p73 = scmp.ne.s32.totalorder %s56, %s72
      %p74 = scmp.eq.s32.totalorder %s23, 0
      %p75 = por %p73, %p74
      %s77 = sadd.s32 %s76, 1
      %p80 = scmp.eq.s32.totalorder %s17, 11
      %p81 = scmp.ne.s32.totalorder %s76, %s78
      %p82 = scmp.eq.s32.totalorder %s17, 0
      %p83 = por %p81, %p82
      %p84 = scmp.ne.s32.totalorder %s76, %s78
      %p85 = scmp.eq.s32.totalorder %s22, 11
      %p86 = por %p84, %p85
      %p87 = scmp.ne.s32.totalorder %s78, %s79
      %p88 = scmp.eq.s32.totalorder %s22, 0
      %p89 = por %p87, %p88
      %p90 = scmp.ne.s32.totalorder %s78, %s79
      %p91 = scmp.eq.s32.totalorder %s23, 11
      %p92 = por %p90, %p91
      %p94 = scmp.ne.s32.totalorder %s79, %s93
      %p95 = scmp.eq.s32.totalorder %s23, 0
      %p96 = por %p94, %p95
      %s98 = sadd.s32 %s97, 1
      %p101 = scmp.eq.s32.totalorder %s17, 11
      %p102 = scmp.ne.s32.totalorder %s97, %s99
      %p103 = scmp.eq.s32.totalorder %s17, 0
      %p104 = por %p102, %p103
      %p105 = scmp.ne.s32.totalorder %s97, %s99
      %p106 = scmp.eq.s32.totalorder %s22, 11
      %p107 = por %p105, %p106
      %p108 = scmp.ne.s32.totalorder %s99, %s100
      %p109 = scmp.eq.s32.totalorder %s22, 0
      %p110 = por %p108, %p109
      %p111 = scmp.ne.s32.totalorder %s99, %s100
      %p112 = scmp.eq.s32.totalorder %s23, 11
      %p113 = por %p111, %p112
      %p115 = scmp.ne.s32.totalorder %s100, %s114
      %p116 = scmp.eq.s32.totalorder %s23, 0
      %p117 = por %p115, %p116
      %s119 = sadd.s32 %s118, 1
      %p122 = scmp.eq.s32.totalorder %s17, 11
      %p123 = scmp.ne.s32.totalorder %s118, %s120
      %p124 = scmp.eq.s32.totalorder %s17, 0
      %p125 = por %p123, %p124
      %p126 = scmp.ne.s32.totalorder %s118, %s120
      %p127 = scmp.eq.s32.totalorder %s22, 11
      %p128 = por %p126, %p127
      %p129 = scmp.ne.s32.totalorder %s120, %s121
      %p130 = scmp.eq.s32.totalorder %s22, 0
      %p131 = por %p129, %p130
      %p132 = scmp.ne.s32.totalorder %s120, %s121
      %p133 = scmp.eq.s32.totalorder %s23, 11
      %p134 = por %p132, %p133
      %p136 = scmp.ne.s32.totalorder %s121, %s135
      %p137 = scmp.eq.s32.totalorder %s23, 0
      %p138 = por %p136, %p137
      %s140 = sadd.s32 %s139, 1
      %p143 = scmp.eq.s32.totalorder %s17, 11
      %p144 = scmp.ne.s32.totalorder %s139, %s141
      %p145 = scmp.eq.s32.totalorder %s17, 0
      %p146 = por %p144, %p145
      %p147 = scmp.ne.s32.totalorder %s139, %s141
      %p148 = scmp.eq.s32.totalorder %s22, 11
      %p149 = por %p147, %p148
      %p150 = scmp.ne.s32.totalorder %s141, %s142
      %p151 = scmp.eq.s32.totalorder %s22, 0
      %p152 = por %p150, %p151
      %p153 = scmp.ne.s32.totalorder %s141, %s142
      %p154 = scmp.eq.s32.totalorder %s23, 11
      %p155 = por %p153, %p154
      %p157 = scmp.ne.s32.totalorder %s142, %s156
      %p158 = scmp.eq.s32.totalorder %s23, 0
      %p159 = por %p157, %p158
      %s161 = sadd.s32 %s160, 1
      %p164 = scmp.eq.s32.totalorder %s17, 11
      %p165 = scmp.ne.s32.totalorder %s160, %s162
      %p166 = scmp.eq.s32.totalorder %s17, 0
      %p167 = por %p165, %p166
      %p168 = scmp.ne.s32.totalorder %s160, %s162
      %p169 = scmp.eq.s32.totalorder %s22, 11
      %p170 = por %p168, %p169
      %p171 = scmp.ne.s32.totalorder %s162, %s163
      %p172 = scmp.eq.s32.totalorder %s22, 0
      %p173 = por %p171, %p172
      %p174 = scmp.ne.s32.totalorder %s162, %s163
      %p175 = scmp.eq.s32.totalorder %s23, 11
      %p176 = por %p174, %p175
      %p178 = scmp.ne.s32.totalorder %s163, %s177
      %p179 = scmp.eq.s32.totalorder %s23, 0
      %p180 = por %p178, %p179
      %s182 = sadd.s32 %s181, 1
      %p185 = scmp.eq.s32.totalorder %s17, 11
      %p186 = scmp.ne.s32.totalorder %s181, %s183
      %p187 = scmp.eq.s32.totalorder %s17, 0
      %p188 = por %p186, %p187
      %p189 = scmp.ne.s32.totalorder %s181, %s183
      %p190 = scmp.eq.s32.totalorder %s22, 11
      %p191 = por %p189, %p190
      %p192 = scmp.ne.s32.totalorder %s183, %s184
      %p193 = scmp.eq.s32.totalorder %s22, 0
      %p194 = por %p192, %p193
      %p195 = scmp.ne.s32.totalorder %s183, %s184
      %p196 = scmp.eq.s32.totalorder %s23, 11
      %p197 = por %p195, %p196
      %p199 = scmp.ne.s32.totalorder %s184, %s198
      %p200 = scmp.eq.s32.totalorder %s23, 0
      %p201 = por %p199, %p200
      %s202 = ssub.s32 %s24, %s43
      %s203 = ssub.s32 %s25, %s39
      %s204 = sor.u32 %s202, %s203
      %p205 = scmp.eq.s32.totalorder %s204, 0
      %s207 = sadd.s32 %s206, 1
      %s208 = scalar_select %p205, %s206, %s207
      %p211 = pneg %p205
      %p212 = scmp.eq.s32.totalorder %s17, 11
      %p213 = por %p211, %p212
      %p214 = scmp.ne.s32.totalorder %s206, %s209
      %p215 = scmp.eq.s32.totalorder %s17, 0
      %p216 = por %p214, %p215
      %p217 = scmp.ne.s32.totalorder %s206, %s209
      %p218 = scmp.eq.s32.totalorder %s22, 11
      %p219 = por %p217, %p218
      %p220 = scmp.ne.s32.totalorder %s209, %s210
      %p221 = scmp.eq.s32.totalorder %s22, 0
      %p222 = por %p220, %p221
      %p223 = scmp.ne.s32.totalorder %s209, %s210
      %p224 = scmp.eq.s32.totalorder %s23, 11
      %p225 = por %p223, %p224
      %p227 = scmp.ne.s32.totalorder %s210, %s226
      %p228 = scmp.eq.s32.totalorder %s23, 0
      %p229 = por %p227, %p228
      %p230 = scmp.le.s32.totalorder 1, %s17
      %p231 = scmp.lt.s32.totalorder %s17, 13
      %p232 = pnand %p230, %p231
      %p233 = pneg %p232
      // Predicated region
      $region9: #{tpu_custom_call.1} parent=5 // pred_check
        _
      $region10: #{tpu_custom_call.1} parent=5 // pred_check_branch
        %235 = sbr.rel (%p232) target = $region12
      $region11: #{tpu_custom_call.1} parent=5 // pred_region
        %s236 = ssub.s32 %s17, 1
        // Predicated region
        $region13: #{tpu_custom_call.1} parent=11 // pred_check
          %p237 = pneg %p89
        $region14: #{tpu_custom_call.1} parent=11 // pred_check_branch
          %239 = sbr.rel (%p237) target = $region16
        $region15: #{tpu_custom_call.1} parent=11 // pred_region
          _
        $region16: #{tpu_custom_call.1} parent=11 // pred_fallthru
          _
        // Predicated region
        $region17: #{tpu_custom_call.1} parent=11 // pred_check
          %p240 = pneg %p110
        $region18: #{tpu_custom_call.1} parent=11 // pred_check_branch
          %242 = sbr.rel (%p240) target = $region20
        $region19: #{tpu_custom_call.1} parent=11 // pred_region
          _
        $region20: #{tpu_custom_call.1} parent=11 // pred_fallthru
          _
        // Predicated region
        $region21: #{tpu_custom_call.1} parent=11 // pred_check
          %p243 = pneg %p131
        $region22: #{tpu_custom_call.1} parent=11 // pred_check_branch
          %245 = sbr.rel (%p243) target = $region24
        $region23: #{tpu_custom_call.1} parent=11 // pred_region
          _
        $region24: #{tpu_custom_call.1} parent=11 // pred_fallthru
          _
        // Predicated region
        $region25: #{tpu_custom_call.1} parent=11 // pred_check
          %p246 = pneg %p152
        $region26: #{tpu_custom_call.1} parent=11 // pred_check_branch
          %248 = sbr.rel (%p246) target = $region28
        $region27: #{tpu_custom_call.1} parent=11 // pred_region
          _
        $region28: #{tpu_custom_call.1} parent=11 // pred_fallthru
          _
        // Predicated region
        $region29: #{tpu_custom_call.1} parent=11 // pred_check
          %p249 = pneg %p173
        $region30: #{tpu_custom_call.1} parent=11 // pred_check_branch
          %251 = sbr.rel (%p249) target = $region32
        $region31: #{tpu_custom_call.1} parent=11 // pred_region
          %s253 = ssub.s32 8192, 8192
          %254 = vsyncadd [#allocation4], %s253
          %s255 = sshll.u32 [#allocation3], 4
          %s256 = int_to_ptr.vmem [resolvable:$true] %s255
          %261 = dma.hbm_to_vmem [thread:$0]  %s5, 8192, %s256, [#allocation4], 512, 512, 32
        $region32: #{tpu_custom_call.1} parent=11 // pred_fallthru
          _
        // Predicated region
        $region33: #{tpu_custom_call.1} parent=11 // pred_check
          %p262 = pneg %p194
        $region34: #{tpu_custom_call.1} parent=11 // pred_check_branch
          %264 = sbr.rel (%p262) target = $region36
        $region35: #{tpu_custom_call.1} parent=11 // pred_region
          _
        $region36: #{tpu_custom_call.1} parent=11 // pred_fallthru
          _
      $region12: #{tpu_custom_call.1} parent=5 // pred_fallthru
        _
      %p265 = scmp.lt.s32.totalorder %s17, 12
      // Predicated region
      $region37: #{tpu_custom_call.1} parent=5 // pred_check
        %p266 = pneg %p265
      $region38: #{tpu_custom_call.1} parent=5 // pred_check_branch
        %268 = sbr.rel (%p266) target = $region40
      $region39: #{tpu_custom_call.1} parent=5 // pred_region
        // Predicated region
        $region41: #{tpu_custom_call.1} parent=39 // pred_check
          %p269 = pneg %p62
        $region42: #{tpu_custom_call.1} parent=39 // pred_check_branch
          %271 = sbr.rel (%p269) target = $region44
        $region43: #{tpu_custom_call.1} parent=39 // pred_region
          %s272 = smul.u32 %s25, 3
          %s273 = sadd.s32 %s272, %s26
          %p274 = scmp.lt.s32.totalorder %s24, 1
          %s275 = scalar_select %p274, %s24, 1
          %p276 = scmp.lt.s32.totalorder %s273, 5
          %s277 = scalar_select %p276, %s273, 5
          %s278 = smul.addr %s275, 6
          %s279 = sadd.s32 %s277, %s278
          %s280 = smul.addr %s279, 4
          %s281 = scalar_lea.vmem %s0, %s280
          %s282 = smul.u32 %s25, 3
          %s283 = sadd.s32 %s282, %s26
        $region44: #{tpu_custom_call.1} parent=39 // pred_fallthru
          _
      $region40: #{tpu_custom_call.1} parent=5 // pred_fallthru
        _
      %p284 = scmp.le.s32.totalorder 1, %s17
      %p285 = scmp.lt.s32.totalorder %s17, 13
      %p286 = pnand %p284, %p285
      %p287 = pneg %p286
      // Predicated region
      $region45: #{tpu_custom_call.1} parent=5 // pred_check
        _
      $region46: #{tpu_custom_call.1} parent=5 // pred_check_branch
        %289 = sbr.rel (%p286) target = $region48
      $region47: #{tpu_custom_call.1} parent=5 // pred_region
        %s290 = ssub.s32 %s17, 1
        // Predicated region
        $region49: #{tpu_custom_call.1} parent=47 // pred_check
          %p291 = pneg %p173
        $region50: #{tpu_custom_call.1} parent=47 // pred_check_branch
          %293 = sbr.rel (%p291) target = $region52
        $region51: #{tpu_custom_call.1} parent=47 // pred_region
          %294 = dma.done [#allocation4], 8192
        $region52: #{tpu_custom_call.1} parent=47 // pred_fallthru
          _
        %s295 = smul.u32 %s28, 3
        %s296 = sadd.s32 %s295, %s29
        %p297 = scmp.lt.s32.totalorder %s27, 1
        %s298 = scalar_select %p297, %s27, 1
        %p299 = scmp.lt.s32.totalorder %s296, 5
        %s300 = scalar_select %p299, %s296, 5
        %s301 = smul.addr %s298, 6
        %s302 = sadd.s32 %s300, %s301
        %s303 = smul.addr %s302, 4
        %s304 = scalar_lea.vmem %s0, %s303
        %p305 = pneg %p68
        %p306 = pneg %p65
        %p307 = pneg %p89
        %p308 = pneg %p86
        %p309 = pneg %p110
        %p310 = pneg %p107
        %p311 = pneg %p131
        %p312 = pneg %p128
        %p313 = pneg %p152
        %p314 = pneg %p149
        %p315 = pneg %p173
        %p316 = pneg %p170
        %p317 = pneg %p194
        %p318 = pneg %p191
        %p319 = pneg %p222
        %p320 = pneg %p219
        %s321 = sand.u32 %s209, 1
        %s322 = scalar_lea.sflag [#allocation5], %s321
        %s323 = sand.u32 %s209, 1
        %s324 = smul.addr %s323, 8
        %s325 = scalar_lea.vmem [#allocation6], %s324
        %s326 = smul.u32 %s28, 3
        %s327 = sadd.s32 %s326, %s29
        %p328 = scmp.lt.s32.totalorder %s27, 1
        %s329 = scalar_select %p328, %s27, 1
        %p330 = scmp.lt.s32.totalorder %s327, 5
        %s331 = scalar_select %p330, %s327, 5
        %s332 = smul.addr %s329, 6
        %s333 = sadd.s32 %s331, %s332
        %s334 = smul.addr %s333, 4
        %s335 = scalar_lea.vmem %s0, %s334
        %s336 = smul.u32 %s28, 3
        %s337 = sadd.s32 %s336, %s29
        %v340 = vld [vmem:[%s335] sm:$0xf]
        %v341 = vld [vmem:[%s1] sm:$0xf]
        %vm342 = vcmask 64512
        %v344 = vsel %vm342, %v340, 0
        %vm346 = vcmask 1043456
        %v348 = vsel %vm346, %v341, 0
        %350 = vmatprep.subr.bf16.mxu0 0
        %351 = vmatpush1.bf16.msra.mxu0 %v348
        %352 = vmatprep.subr.bf16.mxu0 0
        %353 = vmatpush1.bf16.msra.mxu0 0
        %354 = vmatprep.subr.bf16.mxu0 0
        %355 = vmatpush1.bf16.msra.mxu0 0
        %356 = vmatprep.subr.bf16.mxu0 0
        %357 = vmatpush1.bf16.msra.mxu0 0
        %358 = vmatprep.subr.bf16.mxu0 0
        %359 = vmatpush1.bf16.msra.mxu0 0
        %360 = vmatprep.subr.bf16.mxu0 0
        %361 = vmatpush1.bf16.msra.mxu0 0
        %362 = vmatprep.subr.bf16.mxu0 0
        %363 = vmatpush1.bf16.msra.mxu0 0
        %364 = vmatprep.subr.bf16.mxu0 0
        %365 = vmatpush1.bf16.msra.mxu0 0
        %366 = vmatprep.subr.bf16.mxu0 0
        %367 = vmatpush1.bf16.msra.mxu0 0
        %368 = vmatprep.subr.bf16.mxu0 0
        %369 = vmatpush1.bf16.msra.mxu0 0
        %370 = vmatprep.subr.bf16.mxu0 0
        %371 = vmatpush1.bf16.msra.mxu0 0
        %372 = vmatprep.subr.bf16.mxu0 0
        %373 = vmatpush1.bf16.msra.mxu0 0
        %374 = vmatprep.subr.bf16.mxu0 0
        %375 = vmatpush1.bf16.msra.mxu0 0
        %376 = vmatprep.subr.bf16.mxu0 0
        %377 = vmatpush1.bf16.msra.mxu0 0
        %378 = vmatprep.subr.bf16.mxu0 0
        %379 = vmatpush1.bf16.msra.mxu0 0
        %380 = vmatprep.subr.bf16.mxu0 0
        %381 = vmatpush1.bf16.msra.mxu0 0
        %382 = vmatprep.mubr.bf16.mxu0 0
        %383 = vmatmul.mubr.bf16.gmra.mrb[0].mxu0 %v344
        %v384 = vpop.f32.mrb[0].mxu0
        %v385 = vadd.f32 0.0, %v384
        %v386 = vpop.f32.mrb[0].mxu0
        %v387 = vpop.f32.mrb[0].mxu0
        %v388 = vpop.f32.mrb[0].mxu0
        %389 = vdwg.mxu0
        %v390 = vpack.c.bf16 %v385, %v385
        %v391 = vld [vmem:[%s2] sm:$0x1]
        %v393 = vpack.i.b16 %v391, %v391
        %v395 = vlaneseq
        %v396 = vshrl.u32 %v395, 7
        %v397 = vsub.s32 0, %v396
        %v398 = vrot.slane %v393, %v397
        %v399 = vadd.bf16 %v390, %v398
        %v400 = vmax.bf16 %v399, 0
        %v401 = vld [vmem:[%s3] sm:$0xf]
        %v402 = vld [vmem:[%s3 + $0x4] sm:$0xf]
        %v403 = vld [vmem:[%s3 + $0x8] sm:$0xf]
        %v404 = vld [vmem:[%s3 + $0xc] sm:$0xf]
        %v405 = vld [vmem:[%s3 + $0x10] sm:$0xf]
        %v406 = vld [vmem:[%s3 + $0x14] sm:$0xf]
        %v407 = vld [vmem:[%s3 + $0x18] sm:$0xf]
        %v408 = vld [vmem:[%s3 + $0x1c] sm:$0xf]
        %v417 = vunpack.c.l.b16 %v401
        %v418 = vunpack.c.l.b16 %v402
        %v419 = vunpack.c.l.b16 %v403
        %v420 = vunpack.c.l.b16 %v404
        %v421 = vunpack.c.l.b16 %v405
        %v422 = vunpack.c.l.b16 %v406
        %v423 = vunpack.c.l.b16 %v407
        %v424 = vunpack.c.l.b16 %v408
        %v425 = vpack.c.b16 %v418, %v417
        %v426 = vpack.c.b16 %v420, %v419
        %v427 = vpack.c.b16 %v422, %v421
        %v428 = vpack.c.b16 %v424, %v423
        %vm433 = vcmask 523264
        %v435 = vsel %vm433, %v400, 0
        %437 = vmatprep.subr.bf16.mxu0 0
        %438 = vmatpush1.bf16.msra.mxu0 %v425
        %439 = vmatprep.subr.bf16.mxu0 0
        %440 = vmatpush1.bf16.msra.mxu0 %v426
        %441 = vmatprep.subr.bf16.mxu0 0
        %442 = vmatpush1.bf16.msra.mxu0 %v427
        %443 = vmatprep.subr.bf16.mxu0 0
        %444 = vmatpush1.bf16.msra.mxu0 %v428
        %445 = vmatprep.subr.bf16.mxu0 0
        %446 = vmatpush1.bf16.msra.mxu0 0
        %447 = vmatprep.subr.bf16.mxu0 0
        %448 = vmatpush1.bf16.msra.mxu0 0
        %449 = vmatprep.subr.bf16.mxu0 0
        %450 = vmatpush1.bf16.msra.mxu0 0
        %451 = vmatprep.subr.bf16.mxu0 0
        %452 = vmatpush1.bf16.msra.mxu0 0
        %453 = vmatprep.subr.bf16.mxu0 0
        %454 = vmatpush1.bf16.msra.mxu0 0
        %455 = vmatprep.subr.bf16.mxu0 0
        %456 = vmatpush1.bf16.msra.mxu0 0
        %457 = vmatprep.subr.bf16.mxu0 0
        %458 = vmatpush1.bf16.msra.mxu0 0
        %459 = vmatprep.subr.bf16.mxu0 0
        %460 = vmatpush1.bf16.msra.mxu0 0
        %461 = vmatprep.subr.bf16.mxu0 0
        %462 = vmatpush1.bf16.msra.mxu0 0
        %463 = vmatprep.subr.bf16.mxu0 0
        %464 = vmatpush1.bf16.msra.mxu0 0
        %465 = vmatprep.subr.bf16.mxu0 0
        %466 = vmatpush1.bf16.msra.mxu0 0
        %467 = vmatprep.subr.bf16.mxu0 0
        %468 = vmatpush1.bf16.msra.mxu0 0
        %469 = vmatprep.mubr.bf16.mxu0 0
        %470 = vmatmul.mubr.bf16.gmra.mrb[0].mxu0 %v435
        %v471 = vpop.f32.mrb[0].mxu0
        %v472 = vadd.f32 0.0, %v471
        %v473 = vpop.f32.mrb[0].mxu0
        %v474 = vpop.f32.mrb[0].mxu0
        %v475 = vpop.f32.mrb[0].mxu0
        %476 = vdwg.mxu0
        %v477 = vpack.c.bf16 %v472, %v472
        %v478 = vld [vmem:[%s4] sm:$0x1]
        %v480 = vpack.i.b16 %v478, %v478
        %v482 = vlaneseq
        %v483 = vshrl.u32 %v482, 7
        %v484 = vsub.s32 0, %v483
        %v485 = vrot.slane %v480, %v484
        %v486 = vadd.bf16 %v477, %v485
        %v487 = vmax.bf16 %v486, 0
        %v488 = vld [vmem:[#allocation3] sm:$0xff]
        %v489 = vld [vmem:[#allocation3 + $0x8] sm:$0xff]
        %v490 = vld [vmem:[#allocation3 + $0x10] sm:$0xff]
        %v491 = vld [vmem:[#allocation3 + $0x18] sm:$0xff]
        %v492 = vld [vmem:[#allocation3 + $0x20] sm:$0xff]
        %v493 = vld [vmem:[#allocation3 + $0x28] sm:$0xff]
        %v494 = vld [vmem:[#allocation3 + $0x30] sm:$0xff]
        %v495 = vld [vmem:[#allocation3 + $0x38] sm:$0xff]
        %v496 = vld [vmem:[#allocation3 + $0x40] sm:$0xff]
        %v497 = vld [vmem:[#allocation3 + $0x48] sm:$0xff]
        %v498 = vld [vmem:[#allocation3 + $0x50] sm:$0xff]
        %v499 = vld [vmem:[#allocation3 + $0x58] sm:$0xff]
        %v500 = vld [vmem:[#allocation3 + $0x60] sm:$0xff]
        %v501 = vld [vmem:[#allocation3 + $0x68] sm:$0xff]
        %v502 = vld [vmem:[#allocation3 + $0x70] sm:$0xff]
        %v503 = vld [vmem:[#allocation3 + $0x78] sm:$0xff]
        %v504 = vld [vmem:[#allocation3 + $0x80] sm:$0xff]
        %v505 = vld [vmem:[#allocation3 + $0x88] sm:$0xff]
        %v506 = vld [vmem:[#allocation3 + $0x90] sm:$0xff]
        %v507 = vld [vmem:[#allocation3 + $0x98] sm:$0xff]
        %v508 = vld [vmem:[#allocation3 + $0xa0] sm:$0xff]
        %v509 = vld [vmem:[#allocation3 + $0xa8] sm:$0xff]
        %v510 = vld [vmem:[#allocation3 + $0xb0] sm:$0xff]
        %v511 = vld [vmem:[#allocation3 + $0xb8] sm:$0xff]
        %v512 = vld [vmem:[#allocation3 + $0xc0] sm:$0xff]
        %v513 = vld [vmem:[#allocation3 + $0xc8] sm:$0xff]
        %v514 = vld [vmem:[#allocation3 + $0xd0] sm:$0xff]
        %v515 = vld [vmem:[#allocation3 + $0xd8] sm:$0xff]
        %v516 = vld [vmem:[#allocation3 + $0xe0] sm:$0xff]
        %v517 = vld [vmem:[#allocation3 + $0xe8] sm:$0xff]
        %v518 = vld [vmem:[#allocation3 + $0xf0] sm:$0xff]
        %v519 = vld [vmem:[#allocation3 + $0xf8] sm:$0xff]
        %v520 = vld [vmem:[#allocation3 + $0x100] sm:$0xff]
        %v521 = vld [vmem:[#allocation3 + $0x108] sm:$0xff]
        %v522 = vld [vmem:[#allocation3 + $0x110] sm:$0xff]
        %v523 = vld [vmem:[#allocation3 + $0x118] sm:$0xff]
        %v524 = vld [vmem:[#allocation3 + $0x120] sm:$0xff]
        %v525 = vld [vmem:[#allocation3 + $0x128] sm:$0xff]
        %v526 = vld [vmem:[#allocation3 + $0x130] sm:$0xff]
        %v527 = vld [vmem:[#allocation3 + $0x138] sm:$0xff]
        %v528 = vld [vmem:[#allocation3 + $0x140] sm:$0xff]
        %v529 = vld [vmem:[#allocation3 + $0x148] sm:$0xff]
        %v530 = vld [vmem:[#allocation3 + $0x150] sm:$0xff]
        %v531 = vld [vmem:[#allocation3 + $0x158] sm:$0xff]
        %v532 = vld [vmem:[#allocation3 + $0x160] sm:$0xff]
        %v533 = vld [vmem:[#allocation3 + $0x168] sm:$0xff]
        %v534 = vld [vmem:[#allocation3 + $0x170] sm:$0xff]
        %v535 = vld [vmem:[#allocation3 + $0x178] sm:$0xff]
        %v536 = vld [vmem:[#allocation3 + $0x180] sm:$0xff]
        %v537 = vld [vmem:[#allocation3 + $0x188] sm:$0xff]
        %v538 = vld [vmem:[#allocation3 + $0x190] sm:$0xff]
        %v539 = vld [vmem:[#allocation3 + $0x198] sm:$0xff]
        %v540 = vld [vmem:[#allocation3 + $0x1a0] sm:$0xff]
        %v541 = vld [vmem:[#allocation3 + $0x1a8] sm:$0xff]
        %v542 = vld [vmem:[#allocation3 + $0x1b0] sm:$0xff]
        %v543 = vld [vmem:[#allocation3 + $0x1b8] sm:$0xff]
        %v544 = vld [vmem:[#allocation3 + $0x1c0] sm:$0xff]
        %v545 = vld [vmem:[#allocation3 + $0x1c8] sm:$0xff]
        %v546 = vld [vmem:[#allocation3 + $0x1d0] sm:$0xff]
        %v547 = vld [vmem:[#allocation3 + $0x1d8] sm:$0xff]
        %v548 = vld [vmem:[#allocation3 + $0x1e0] sm:$0xff]
        %v549 = vld [vmem:[#allocation3 + $0x1e8] sm:$0xff]
        %v550 = vld [vmem:[#allocation3 + $0x1f0] sm:$0xff]
        %v551 = vld [vmem:[#allocation3 + $0x1f8] sm:$0xff]
        %v616 = vunpack.c.l.b16 %v488
        %v617 = vunpack.c.h.b16 %v488
        %v618 = vunpack.c.l.b16 %v489
        %v619 = vunpack.c.h.b16 %v489
        %v620 = vunpack.c.l.b16 %v490
        %v621 = vunpack.c.h.b16 %v490
        %v622 = vunpack.c.l.b16 %v491
        %v623 = vunpack.c.h.b16 %v491
        %v624 = vunpack.c.l.b16 %v492
        %v625 = vunpack.c.h.b16 %v492
        %v626 = vunpack.c.l.b16 %v493
        %v627 = vunpack.c.h.b16 %v493
        %v628 = vunpack.c.l.b16 %v494
        %v629 = vunpack.c.h.b16 %v494
        %v630 = vunpack.c.l.b16 %v495
        %v631 = vunpack.c.h.b16 %v495
        %v632 = vunpack.c.l.b16 %v496
        %v633 = vunpack.c.h.b16 %v496
        %v634 = vunpack.c.l.b16 %v497
        %v635 = vunpack.c.h.b16 %v497
        %v636 = vunpack.c.l.b16 %v498
        %v637 = vunpack.c.h.b16 %v498
        %v638 = vunpack.c.l.b16 %v499
        %v639 = vunpack.c.h.b16 %v499
        %v640 = vunpack.c.l.b16 %v500
        %v641 = vunpack.c.h.b16 %v500
        %v642 = vunpack.c.l.b16 %v501
        %v643 = vunpack.c.h.b16 %v501
        %v644 = vunpack.c.l.b16 %v502
        %v645 = vunpack.c.h.b16 %v502
        %v646 = vunpack.c.l.b16 %v503
        %v647 = vunpack.c.h.b16 %v503
        %v648 = vunpack.c.l.b16 %v504
        %v649 = vunpack.c.h.b16 %v504
        %v650 = vunpack.c.l.b16 %v505
        %v651 = vunpack.c.h.b16 %v505
        %v652 = vunpack.c.l.b16 %v506
        %v653 = vunpack.c.h.b16 %v506
        %v654 = vunpack.c.l.b16 %v507
        %v655 = vunpack.c.h.b16 %v507
        %v656 = vunpack.c.l.b16 %v508
        %v657 = vunpack.c.h.b16 %v508
        %v658 = vunpack.c.l.b16 %v509
        %v659 = vunpack.c.h.b16 %v509
        %v660 = vunpack.c.l.b16 %v510
        %v661 = vunpack.c.h.b16 %v510
        %v662 = vunpack.c.l.b16 %v511
        %v663 = vunpack.c.h.b16 %v511
        %v664 = vunpack.c.l.b16 %v512
        %v665 = vunpack.c.h.b16 %v512
        %v666 = vunpack.c.l.b16 %v513
        %v667 = vunpack.c.h.b16 %v513
        %v668 = vunpack.c.l.b16 %v514
        %v669 = vunpack.c.h.b16 %v514
        %v670 = vunpack.c.l.b16 %v515
        %v671 = vunpack.c.h.b16 %v515
        %v672 = vunpack.c.l.b16 %v516
        %v673 = vunpack.c.h.b16 %v516
        %v674 = vunpack.c.l.b16 %v517
        %v675 = vunpack.c.h.b16 %v517
        %v676 = vunpack.c.l.b16 %v518
        %v677 = vunpack.c.h.b16 %v518
        %v678 = vunpack.c.l.b16 %v519
        %v679 = vunpack.c.h.b16 %v519
        %v680 = vunpack.c.l.b16 %v520
        %v681 = vunpack.c.h.b16 %v520
        %v682 = vunpack.c.l.b16 %v521
        %v683 = vunpack.c.h.b16 %v521
        %v684 = vunpack.c.l.b16 %v522
        %v685 = vunpack.c.h.b16 %v522
        %v686 = vunpack.c.l.b16 %v523
        %v687 = vunpack.c.h.b16 %v523
        %v688 = vunpack.c.l.b16 %v524
        %v689 = vunpack.c.h.b16 %v524
        %v690 = vunpack.c.l.b16 %v525
        %v691 = vunpack.c.h.b16 %v525
        %v692 = vunpack.c.l.b16 %v526
        %v693 = vunpack.c.h.b16 %v526
        %v694 = vunpack.c.l.b16 %v527
        %v695 = vunpack.c.h.b16 %v527
        %v696 = vunpack.c.l.b16 %v528
        %v697 = vunpack.c.h.b16 %v528
        %v698 = vunpack.c.l.b16 %v529
        %v699 = vunpack.c.h.b16 %v529
        %v700 = vunpack.c.l.b16 %v530
        %v701 = vunpack.c.h.b16 %v530
        %v702 = vunpack.c.l.b16 %v531
        %v703 = vunpack.c.h.b16 %v531
        %v704 = vunpack.c.l.b16 %v532
        %v705 = vunpack.c.h.b16 %v532
        %v706 = vunpack.c.l.b16 %v533
        %v707 = vunpack.c.h.b16 %v533
        %v708 = vunpack.c.l.b16 %v534
        %v709 = vunpack.c.h.b16 %v534
        %v710 = vunpack.c.l.b16 %v535
        %v711 = vunpack.c.h.b16 %v535
        %v712 = vunpack.c.l.b16 %v536
        %v713 = vunpack.c.h.b16 %v536
        %v714 = vunpack.c.l.b16 %v537
        %v715 = vunpack.c.h.b16 %v537
        %v716 = vunpack.c.l.b16 %v538
        %v717 = vunpack.c.h.b16 %v538
        %v718 = vunpack.c.l.b16 %v539
        %v719 = vunpack.c.h.b16 %v539
        %v720 = vunpack.c.l.b16 %v540
        %v721 = vunpack.c.h.b16 %v540
        %v722 = vunpack.c.l.b16 %v541
        %v723 = vunpack.c.h.b16 %v541
        %v724 = vunpack.c.l.b16 %v542
        %v725 = vunpack.c.h.b16 %v542
        %v726 = vunpack.c.l.b16 %v543
        %v727 = vunpack.c.h.b16 %v543
        %v728 = vunpack.c.l.b16 %v544
        %v729 = vunpack.c.h.b16 %v544
        %v730 = vunpack.c.l.b16 %v545
        %v731 = vunpack.c.h.b16 %v545
        %v732 = vunpack.c.l.b16 %v546
        %v733 = vunpack.c.h.b16 %v546
        %v734 = vunpack.c.l.b16 %v547
        %v735 = vunpack.c.h.b16 %v547
        %v736 = vunpack.c.l.b16 %v548
        %v737 = vunpack.c.h.b16 %v548
        %v738 = vunpack.c.l.b16 %v549
        %v739 = vunpack.c.h.b16 %v549
        %v740 = vunpack.c.l.b16 %v550
        %v741 = vunpack.c.h.b16 %v550
        %v742 = vunpack.c.l.b16 %v551
        %v743 = vunpack.c.h.b16 %v551
        %v744 = vpack.c.b16 %v624, %v616
        %v745 = vpack.c.b16 %v625, %v617
        %v746 = vpack.c.b16 %v626, %v618
        %v747 = vpack.c.b16 %v627, %v619
        %v748 = vpack.c.b16 %v628, %v620
        %v749 = vpack.c.b16 %v629, %v621
        %v750 = vpack.c.b16 %v630, %v622
        %v751 = vpack.c.b16 %v631, %v623
        %v752 = vpack.c.b16 %v640, %v632
        %v753 = vpack.c.b16 %v641, %v633
        %v754 = vpack.c.b16 %v642, %v634
        %v755 = vpack.c.b16 %v643, %v635
        %v756 = vpack.c.b16 %v644, %v636
        %v757 = vpack.c.b16 %v645, %v637
        %v758 = vpack.c.b16 %v646, %v638
        %v759 = vpack.c.b16 %v647, %v639
        %v760 = vpack.c.b16 %v656, %v648
        %v761 = vpack.c.b16 %v657, %v649
        %v762 = vpack.c.b16 %v658, %v650
        %v763 = vpack.c.b16 %v659, %v651
        %v764 = vpack.c.b16 %v660, %v652
        %v765 = vpack.c.b16 %v661, %v653
        %v766 = vpack.c.b16 %v662, %v654
        %v767 = vpack.c.b16 %v663, %v655
        %v768 = vpack.c.b16 %v672, %v664
        %v769 = vpack.c.b16 %v673, %v665
        %v770 = vpack.c.b16 %v674, %v666
        %v771 = vpack.c.b16 %v675, %v667
        %v772 = vpack.c.b16 %v676, %v668
        %v773 = vpack.c.b16 %v677, %v669
        %v774 = vpack.c.b16 %v678, %v670
        %v775 = vpack.c.b16 %v679, %v671
        %v776 = vpack.c.b16 %v688, %v680
        %v777 = vpack.c.b16 %v689, %v681
        %v778 = vpack.c.b16 %v690, %v682
        %v779 = vpack.c.b16 %v691, %v683
        %v780 = vpack.c.b16 %v692, %v684
        %v781 = vpack.c.b16 %v693, %v685
        %v782 = vpack.c.b16 %v694, %v686
        %v783 = vpack.c.b16 %v695, %v687
        %v784 = vpack.c.b16 %v704, %v696
        %v785 = vpack.c.b16 %v705, %v697
        %v786 = vpack.c.b16 %v706, %v698
        %v787 = vpack.c.b16 %v707, %v699
        %v788 = vpack.c.b16 %v708, %v700
        %v789 = vpack.c.b16 %v709, %v701
        %v790 = vpack.c.b16 %v710, %v702
        %v791 = vpack.c.b16 %v711, %v703
        %v792 = vpack.c.b16 %v720, %v712
        %v793 = vpack.c.b16 %v721, %v713
        %v794 = vpack.c.b16 %v722, %v714
        %v795 = vpack.c.b16 %v723, %v715
        %v796 = vpack.c.b16 %v724, %v716
        %v797 = vpack.c.b16 %v725, %v717
        %v798 = vpack.c.b16 %v726, %v718
        %v799 = vpack.c.b16 %v727, %v719
        %v800 = vpack.c.b16 %v736, %v728
        %v801 = vpack.c.b16 %v737, %v729
        %v802 = vpack.c.b16 %v738, %v730
        %v803 = vpack.c.b16 %v739, %v731
        %v804 = vpack.c.b16 %v740, %v732
        %v805 = vpack.c.b16 %v741, %v733
        %v806 = vpack.c.b16 %v742, %v734
        %v807 = vpack.c.b16 %v743, %v735
        %872 = vmatprep.subr.bf16.mxu0 %v745
        %873 = vmatpush1.bf16.msra.mxu0 %v744
        %874 = vmatprep.subr.bf16.mxu0 %v753
        %875 = vmatpush1.bf16.msra.mxu0 %v752
        %876 = vmatprep.subr.bf16.mxu0 %v761
        %877 = vmatpush1.bf16.msra.mxu0 %v760
        %878 = vmatprep.subr.bf16.mxu0 %v769
        %879 = vmatpush1.bf16.msra.mxu0 %v768
        %880 = vmatprep.subr.bf16.mxu0 %v777
        %881 = vmatpush1.bf16.msra.mxu0 %v776
        %882 = vmatprep.subr.bf16.mxu0 %v785
        %883 = vmatpush1.bf16.msra.mxu0 %v784
        %884 = vmatprep.subr.bf16.mxu0 %v793
        %885 = vmatpush1.bf16.msra.mxu0 %v792
        %886 = vmatprep.subr.bf16.mxu0 %v801
        %887 = vmatpush1.bf16.msra.mxu0 %v800
        %888 = vmatprep.subr.bf16.mxu0 0
        %889 = vmatpush1.bf16.msra.mxu0 0
        %890 = vmatprep.subr.bf16.mxu0 0
        %891 = vmatpush1.bf16.msra.mxu0 0
        %892 = vmatprep.subr.bf16.mxu0 0
        %893 = vmatpush1.bf16.msra.mxu0 0
        %894 = vmatprep.subr.bf16.mxu0 0
        %895 = vmatpush1.bf16.msra.mxu0 0
        %896 = vmatprep.subr.bf16.mxu0 0
        %897 = vmatpush1.bf16.msra.mxu0 0
        %898 = vmatprep.subr.bf16.mxu0 0
        %899 = vmatpush1.bf16.msra.mxu0 0
        %900 = vmatprep.subr.bf16.mxu0 0
        %901 = vmatpush1.bf16.msra.mxu0 0
        %902 = vmatprep.subr.bf16.mxu0 0
        %903 = vmatpush1.bf16.msra.mxu0 0
        %904 = vmatprep.mubr.bf16.mxu0 0
        %905 = vmatmul.mubr.bf16.gmra.mrb[0].mxu0 %v487
        %v906 = vpop.f32.mrb[0].mxu0
        %v907 = vadd.f32 0.0, %v906
        %v908 = vpop.f32.mrb[0].mxu0
        %v909 = vadd.f32 0.0, %v908
        %v910 = vpop.f32.mrb[0].mxu0
        %v911 = vpop.f32.mrb[0].mxu0
        %912 = vdwg.mxu0
        %913 = vmatprep.subr.bf16.mxu0 %v747
        %914 = vmatpush1.bf16.msra.mxu0 %v746
        %915 = vmatprep.subr.bf16.mxu0 %v755
        %916 = vmatpush1.bf16.msra.mxu0 %v754
        %917 = vmatprep.subr.bf16.mxu0 %v763
        %918 = vmatpush1.bf16.msra.mxu0 %v762
        %919 = vmatprep.subr.bf16.mxu0 %v771
        %920 = vmatpush1.bf16.msra.mxu0 %v770
        %921 = vmatprep.subr.bf16.mxu0 %v779
        %922 = vmatpush1.bf16.msra.mxu0 %v778
        %923 = vmatprep.subr.bf16.mxu0 %v787
        %924 = vmatpush1.bf16.msra.mxu0 %v786
        %925 = vmatprep.subr.bf16.mxu0 %v795
        %926 = vmatpush1.bf16.msra.mxu0 %v794
        %927 = vmatprep.subr.bf16.mxu0 %v803
        %928 = vmatpush1.bf16.msra.mxu0 %v802
        %929 = vmatprep.subr.bf16.mxu0 0
        %930 = vmatpush1.bf16.msra.mxu0 0
        %931 = vmatprep.subr.bf16.mxu0 0
        %932 = vmatpush1.bf16.msra.mxu0 0
        %933 = vmatprep.subr.bf16.mxu0 0
        %934 = vmatpush1.bf16.msra.mxu0 0
        %935 = vmatprep.subr.bf16.mxu0 0
        %936 = vmatpush1.bf16.msra.mxu0 0
        %937 = vmatprep.subr.bf16.mxu0 0
        %938 = vmatpush1.bf16.msra.mxu0 0
        %939 = vmatprep.subr.bf16.mxu0 0
        %940 = vmatpush1.bf16.msra.mxu0 0
        %941 = vmatprep.subr.bf16.mxu0 0
        %942 = vmatpush1.bf16.msra.mxu0 0
        %943 = vmatprep.subr.bf16.mxu0 0
        %944 = vmatpush1.bf16.msra.mxu0 0
        %945 = vmatprep.mubr.bf16.mxu0 0
        %946 = vmatmul.mubr.bf16.gmra.mrb[0].mxu0 %v487
        %v947 = vpop.f32.mrb[0].mxu0
        %v948 = vadd.f32 0.0, %v947
        %v949 = vpop.f32.mrb[0].mxu0
        %v950 = vadd.f32 0.0, %v949
        %v951 = vpop.f32.mrb[0].mxu0
        %v952 = vpop.f32.mrb[0].mxu0
        %953 = vdwg.mxu0
        %954 = vmatprep.subr.bf16.mxu0 %v749
        %955 = vmatpush1.bf16.msra.mxu0 %v748
        %956 = vmatprep.subr.bf16.mxu0 %v757
        %957 = vmatpush1.bf16.msra.mxu0 %v756
        %958 = vmatprep.subr.bf16.mxu0 %v765
        %959 = vmatpush1.bf16.msra.mxu0 %v764
        %960 = vmatprep.subr.bf16.mxu0 %v773
        %961 = vmatpush1.bf16.msra.mxu0 %v772
        %962 = vmatprep.subr.bf16.mxu0 %v781
        %963 = vmatpush1.bf16.msra.mxu0 %v780
        %964 = vmatprep.subr.bf16.mxu0 %v789
        %965 = vmatpush1.bf16.msra.mxu0 %v788
        %966 = vmatprep.subr.bf16.mxu0 %v797
        %967 = vmatpush1.bf16.msra.mxu0 %v796
        %968 = vmatprep.subr.bf16.mxu0 %v805
        %969 = vmatpush1.bf16.msra.mxu0 %v804
        %970 = vmatprep.subr.bf16.mxu0 0
        %971 = vmatpush1.bf16.msra.mxu0 0
        %972 = vmatprep.subr.bf16.mxu0 0
        %973 = vmatpush1.bf16.msra.mxu0 0
        %974 = vmatprep.subr.bf16.mxu0 0
        %975 = vmatpush1.bf16.msra.mxu0 0
        %976 = vmatprep.subr.bf16.mxu0 0
        %977 = vmatpush1.bf16.msra.mxu0 0
        %978 = vmatprep.subr.bf16.mxu0 0
        %979 = vmatpush1.bf16.msra.mxu0 0
        %980 = vmatprep.subr.bf16.mxu0 0
        %981 = vmatpush1.bf16.msra.mxu0 0
        %982 = vmatprep.subr.bf16.mxu0 0
        %983 = vmatpush1.bf16.msra.mxu0 0
        %984 = vmatprep.subr.bf16.mxu0 0
        %985 = vmatpush1.bf16.msra.mxu0 0
        %986 = vmatprep.mubr.bf16.mxu0 0
        %987 = vmatmul.mubr.bf16.gmra.mrb[0].mxu0 %v487
        %v988 = vpop.f32.mrb[0].mxu0
        %v989 = vadd.f32 0.0, %v988
        %v990 = vpop.f32.mrb[0].mxu0
        %v991 = vadd.f32 0.0, %v990
        %v992 = vpop.f32.mrb[0].mxu0
        %v993 = vpop.f32.mrb[0].mxu0
        %994 = vdwg.mxu0
        %995 = vmatprep.subr.bf16.mxu0 %v751
        %996 = vmatpush1.bf16.msra.mxu0 %v750
        %997 = vmatprep.subr.bf16.mxu0 %v759
        %998 = vmatpush1.bf16.msra.mxu0 %v758
        %999 = vmatprep.subr.bf16.mxu0 %v767
        %1000 = vmatpush1.bf16.msra.mxu0 %v766
        %1001 = vmatprep.subr.bf16.mxu0 %v775
        %1002 = vmatpush1.bf16.msra.mxu0 %v774
        %1003 = vmatprep.subr.bf16.mxu0 %v783
        %1004 = vmatpush1.bf16.msra.mxu0 %v782
        %1005 = vmatprep.subr.bf16.mxu0 %v791
        %1006 = vmatpush1.bf16.msra.mxu0 %v790
        %1007 = vmatprep.subr.bf16.mxu0 %v799
        %1008 = vmatpush1.bf16.msra.mxu0 %v798
        %1009 = vmatprep.subr.bf16.mxu0 %v807
        %1010 = vmatpush1.bf16.msra.mxu0 %v806
        %1011 = vmatprep.subr.bf16.mxu0 0
        %1012 = vmatpush1.bf16.msra.mxu0 0
        %1013 = vmatprep.subr.bf16.mxu0 0
        %1014 = vmatpush1.bf16.msra.mxu0 0
        %1015 = vmatprep.subr.bf16.mxu0 0
        %1016 = vmatpush1.bf16.msra.mxu0 0
        %1017 = vmatprep.subr.bf16.mxu0 0
        %1018 = vmatpush1.bf16.msra.mxu0 0
        %1019 = vmatprep.subr.bf16.mxu0 0
        %1020 = vmatpush1.bf16.msra.mxu0 0
        %1021 = vmatprep.subr.bf16.mxu0 0
        %1022 = vmatpush1.bf16.msra.mxu0 0
        %1023 = vmatprep.subr.bf16.mxu0 0
        %1024 = vmatpush1.bf16.msra.mxu0 0
        %1025 = vmatprep.subr.bf16.mxu0 0
        %1026 = vmatpush1.bf16.msra.mxu0 0
        %1027 = vmatprep.mubr.bf16.mxu0 0
        %1028 = vmatmul.mubr.bf16.gmra.mrb[0].mxu0 %v487
        %v1029 = vpop.f32.mrb[0].mxu0
        %v1030 = vadd.f32 0.0, %v1029
        %v1031 = vpop.f32.mrb[0].mxu0
        %v1032 = vadd.f32 0.0, %v1031
        %v1033 = vpop.f32.mrb[0].mxu0
        %v1034 = vpop.f32.mrb[0].mxu0
        %1035 = vdwg.mxu0
        %v1036 = vpack.c.bf16 %v907, %v907
        %v1037 = vpack.c.bf16 %v909, %v909
        %v1038 = vpack.c.bf16 %v948, %v948
        %v1039 = vpack.c.bf16 %v950, %v950
        %v1040 = vpack.c.bf16 %v989, %v989
        %v1041 = vpack.c.bf16 %v991, %v991
        %v1042 = vpack.c.bf16 %v1030, %v1030
        %v1043 = vpack.c.bf16 %v1032, %v1032
        %v1044 = vld [vmem:[%s6] sm:$0xff]
        %v1046 = vcombine.high %v1044, %v1044
        %v1048 = vunpack.c.l.s4 1966171168
        %v1049 = vunpack.c.0.s8 %v1048
        %v1050 = vlaneseq
        %v1051 = vshrl.u32 %v1050, 7
        %v1052 = vsub.s32 %v1049, %v1051
        %v1053 = vrot.slane %v1044, %v1052
        %v1055 = vunpack.c.l.s4 1966171168
        %v1056 = vunpack.c.0.s8 %v1055
        %v1057 = vlaneseq
        %v1058 = vshrl.u32 %v1057, 7
        %v1059 = vsub.s32 %v1056, %v1058
        %v1060 = vrot.slane %v1046, %v1059
        %v1061 = vcombine.high %v1053, %v1053
        %v1062 = vcombine.high %v1060, %v1060
        %v1064 = vunpack.c.l.s4 1966171168
        %v1065 = vunpack.c.0.s8 %v1064
        %v1066 = vlaneseq
        %v1067 = vshrl.u32 %v1066, 7
        %v1068 = vsub.s32 %v1065, %v1067
        %v1069 = vrot.slane %v1053, %v1068
        %v1071 = vunpack.c.l.s4 1966171168
        %v1072 = vunpack.c.0.s8 %v1071
        %v1073 = vlaneseq
        %v1074 = vshrl.u32 %v1073, 7
        %v1075 = vsub.s32 %v1072, %v1074
        %v1076 = vrot.slane %v1060, %v1075
        %v1078 = vunpack.c.l.s4 1966171168
        %v1079 = vunpack.c.0.s8 %v1078
        %v1080 = vlaneseq
        %v1081 = vshrl.u32 %v1080, 7
        %v1082 = vsub.s32 %v1079, %v1081
        %v1083 = vrot.slane %v1061, %v1082
        %v1085 = vunpack.c.l.s4 1966171168
        %v1086 = vunpack.c.0.s8 %v1085
        %v1087 = vlaneseq
        %v1088 = vshrl.u32 %v1087, 7
        %v1089 = vsub.s32 %v1086, %v1088
        %v1090 = vrot.slane %v1062, %v1089
        %v1091 = vcombine.high %v1069, %v1069
        %v1092 = vcombine.high %v1076, %v1076
        %v1093 = vcombine.high %v1083, %v1083
        %v1094 = vcombine.high %v1090, %v1090
        %v1096 = vpack.i.b16 %v1069, %v1069
        %v1098 = vlaneseq
        %v1099 = vshrl.u32 %v1098, 7
        %v1100 = vsub.s32 0, %v1099
        %v1101 = vrot.slane %v1096, %v1100
        %v1103 = vpack.i.b16 %v1083, %v1083
        %v1105 = vlaneseq
        %v1106 = vshrl.u32 %v1105, 7
        %v1107 = vsub.s32 0, %v1106
        %v1108 = vrot.slane %v1103, %v1107
        %v1110 = vpack.i.b16 %v1091, %v1091
        %v1112 = vlaneseq
        %v1113 = vshrl.u32 %v1112, 7
        %v1114 = vsub.s32 0, %v1113
        %v1115 = vrot.slane %v1110, %v1114
        %v1117 = vpack.i.b16 %v1093, %v1093
        %v1119 = vlaneseq
        %v1120 = vshrl.u32 %v1119, 7
        %v1121 = vsub.s32 0, %v1120
        %v1122 = vrot.slane %v1117, %v1121
        %v1124 = vpack.i.b16 %v1076, %v1076
        %v1126 = vlaneseq
        %v1127 = vshrl.u32 %v1126, 7
        %v1128 = vsub.s32 0, %v1127
        %v1129 = vrot.slane %v1124, %v1128
        %v1131 = vpack.i.b16 %v1090, %v1090
        %v1133 = vlaneseq
        %v1134 = vshrl.u32 %v1133, 7
        %v1135 = vsub.s32 0, %v1134
        %v1136 = vrot.slane %v1131, %v1135
        %v1138 = vpack.i.b16 %v1092, %v1092
        %v1140 = vlaneseq
        %v1141 = vshrl.u32 %v1140, 7
        %v1142 = vsub.s32 0, %v1141
        %v1143 = vrot.slane %v1138, %v1142
        %v1145 = vpack.i.b16 %v1094, %v1094
        %v1147 = vlaneseq
        %v1148 = vshrl.u32 %v1147, 7
        %v1149 = vsub.s32 0, %v1148
        %v1150 = vrot.slane %v1145, %v1149
        %v1151 = vadd.bf16 %v1036, %v1101
        %v1152 = vadd.bf16 %v1037, %v1108
        %v1153 = vadd.bf16 %v1038, %v1115
        %v1154 = vadd.bf16 %v1039, %v1122
        %v1155 = vadd.bf16 %v1040, %v1129
        %v1156 = vadd.bf16 %v1041, %v1136
        %v1157 = vadd.bf16 %v1042, %v1143
        %v1158 = vadd.bf16 %v1043, %v1150
        %v1159 = vmax.bf16 %v1151, 0
        %v1160 = vmax.bf16 %v1152, 0
        %v1161 = vmax.bf16 %v1153, 0
        %v1162 = vmax.bf16 %v1154, 0
        %v1163 = vmax.bf16 %v1155, 0
        %v1164 = vmax.bf16 %v1156, 0
        %v1165 = vmax.bf16 %v1157, 0
        %v1166 = vmax.bf16 %v1158, 0
        %v1169 = vsel %vm346, %v1159, 4286644096
        %v1171 = vunpack.i.l.bf16 %v1169
        %v1172 = vunpack.i.h.bf16 %v1169
        %v1173 = vmax.f32 %v1171, %v1172
        %v1174 = vrot.slane %v1173, 4
        %v1175 = vmax.f32 %v1173, %v1174
        %v1176 = vrot.slane %v1175, 2
        %v1177 = vmax.f32 %v1175, %v1176
        %v1178 = vrot.slane %v1177, 1
        %v1179 = vmax.f32 %v1177, %v1178
        %v1180 = vpack.i.bf16 %v1179, %v1179
        %v1182 = vsel %vm346, %v1160, 4286644096
        %v1184 = vunpack.i.l.bf16 %v1182
        %v1185 = vunpack.i.h.bf16 %v1182
        %v1186 = vmax.f32 %v1184, %v1185
        %v1187 = vrot.slane %v1186, 4
        %v1188 = vmax.f32 %v1186, %v1187
        %v1189 = vrot.slane %v1188, 2
        %v1190 = vmax.f32 %v1188, %v1189
        %v1191 = vrot.slane %v1190, 1
        %v1192 = vmax.f32 %v1190, %v1191
        %v1193 = vpack.i.bf16 %v1192, %v1192
        %v1195 = vsel %vm346, %v1161, 4286644096
        %v1197 = vunpack.i.l.bf16 %v1195
        %v1198 = vunpack.i.h.bf16 %v1195
        %v1199 = vmax.f32 %v1197, %v1198
        %v1200 = vrot.slane %v1199, 4
        %v1201 = vmax.f32 %v1199, %v1200
        %v1202 = vrot.slane %v1201, 2
        %v1203 = vmax.f32 %v1201, %v1202
        %v1204 = vrot.slane %v1203, 1
        %v1205 = vmax.f32 %v1203, %v1204
        %v1206 = vpack.i.bf16 %v1205, %v1205
        %v1208 = vsel %vm346, %v1162, 4286644096
        %v1210 = vunpack.i.l.bf16 %v1208
        %v1211 = vunpack.i.h.bf16 %v1208
        %v1212 = vmax.f32 %v1210, %v1211
        %v1213 = vrot.slane %v1212, 4
        %v1214 = vmax.f32 %v1212, %v1213
        %v1215 = vrot.slane %v1214, 2
        %v1216 = vmax.f32 %v1214, %v1215
        %v1217 = vrot.slane %v1216, 1
        %v1218 = vmax.f32 %v1216, %v1217
        %v1219 = vpack.i.bf16 %v1218, %v1218
        %v1221 = vsel %vm346, %v1163, 4286644096
        %v1223 = vunpack.i.l.bf16 %v1221
        %v1224 = vunpack.i.h.bf16 %v1221
        %v1225 = vmax.f32 %v1223, %v1224
        %v1226 = vrot.slane %v1225, 4
        %v1227 = vmax.f32 %v1225, %v1226
        %v1228 = vrot.slane %v1227, 2
        %v1229 = vmax.f32 %v1227, %v1228
        %v1230 = vrot.slane %v1229, 1
        %v1231 = vmax.f32 %v1229, %v1230
        %v1232 = vpack.i.bf16 %v1231, %v1231
        %v1234 = vsel %vm346, %v1164, 4286644096
        %v1236 = vunpack.i.l.bf16 %v1234
        %v1237 = vunpack.i.h.bf16 %v1234
        %v1238 = vmax.f32 %v1236, %v1237
        %v1239 = vrot.slane %v1238, 4
        %v1240 = vmax.f32 %v1238, %v1239
        %v1241 = vrot.slane %v1240, 2
        %v1242 = vmax.f32 %v1240, %v1241
        %v1243 = vrot.slane %v1242, 1
        %v1244 = vmax.f32 %v1242, %v1243
        %v1245 = vpack.i.bf16 %v1244, %v1244
        %v1247 = vsel %vm346, %v1165, 4286644096
        %v1249 = vunpack.i.l.bf16 %v1247
        %v1250 = vunpack.i.h.bf16 %v1247
        %v1251 = vmax.f32 %v1249, %v1250
        %v1252 = vrot.slane %v1251, 4
        %v1253 = vmax.f32 %v1251, %v1252
        %v1254 = vrot.slane %v1253, 2
        %v1255 = vmax.f32 %v1253, %v1254
        %v1256 = vrot.slane %v1255, 1
        %v1257 = vmax.f32 %v1255, %v1256
        %v1258 = vpack.i.bf16 %v1257, %v1257
        %v1260 = vsel %vm346, %v1166, 4286644096
        %v1262 = vunpack.i.l.bf16 %v1260
        %v1263 = vunpack.i.h.bf16 %v1260
        %v1264 = vmax.f32 %v1262, %v1263
        %v1265 = vrot.slane %v1264, 4
        %v1266 = vmax.f32 %v1264, %v1265
        %v1267 = vrot.slane %v1266, 2
        %v1268 = vmax.f32 %v1266, %v1267
        %v1269 = vrot.slane %v1268, 1
        %v1270 = vmax.f32 %v1268, %v1269
        %v1271 = vpack.i.bf16 %v1270, %v1270
        %v1272 = vunpack.c.l.bf16 %v1180
        %v1273 = vunpack.c.l.bf16 %v1193
        %v1274 = vunpack.c.l.bf16 %v1206
        %v1275 = vunpack.c.l.bf16 %v1219
        %v1276 = vunpack.c.l.bf16 %v1232
        %v1277 = vunpack.c.l.bf16 %v1245
        %v1278 = vunpack.c.l.bf16 %v1258
        %v1279 = vunpack.c.l.bf16 %v1271
        %p1280 = scmp.eq.s32.totalorder %s29, 0
        // Predicated region
        $region53: #{tpu_custom_call.1} parent=47 // pred_check
          %p1281 = pneg %p1280
        $region54: #{tpu_custom_call.1} parent=47 // pred_check_branch
          %1283 = sbr.rel (%p1281) target = $region56
        $region55: #{tpu_custom_call.1} parent=47 // pred_region
          %1284 = vst [vmem:[#allocation2] sm:$0xff] 0.0
        $region56: #{tpu_custom_call.1} parent=47 // pred_fallthru
          _
        %v1285 = vld [vmem:[#allocation2] sm:$0xff]
        %v1294 = vcombine.low %v1272, %v1273
        %v1295 = vcombine.low %v1274, %v1275
        %v1296 = vcombine.low %v1276, %v1277
        %v1297 = vcombine.low %v1278, %v1279
        %v1299 = vunpack.c.l.s4 1966171168
        %v1300 = vunpack.c.0.s8 %v1299
        %v1301 = vlaneseq
        %v1302 = vshrl.u32 %v1301, 7
        %v1303 = vsub.s32 %v1300, %v1302
        %v1304 = vrot.slane %v1294, %v1303
        %v1306 = vunpack.c.l.s4 1966171168
        %v1307 = vunpack.c.0.s8 %v1306
        %v1308 = vlaneseq
        %v1309 = vshrl.u32 %v1308, 7
        %v1310 = vsub.s32 %v1307, %v1309
        %v1311 = vrot.slane %v1295, %v1310
        %v1313 = vunpack.c.l.s4 1966171168
        %v1314 = vunpack.c.0.s8 %v1313
        %v1315 = vlaneseq
        %v1316 = vshrl.u32 %v1315, 7
        %v1317 = vsub.s32 %v1314, %v1316
        %v1318 = vrot.slane %v1296, %v1317
        %v1320 = vunpack.c.l.s4 1966171168
        %v1321 = vunpack.c.0.s8 %v1320
        %v1322 = vlaneseq
        %v1323 = vshrl.u32 %v1322, 7
        %v1324 = vsub.s32 %v1321, %v1323
        %v1325 = vrot.slane %v1297, %v1324
        %v1326 = vcombine.low %v1304, %v1311
        %v1327 = vcombine.low %v1318, %v1325
        %v1329 = vunpack.c.l.s4 1966171168
        %v1330 = vunpack.c.0.s8 %v1329
        %v1331 = vlaneseq
        %v1332 = vshrl.u32 %v1331, 7
        %v1333 = vsub.s32 %v1330, %v1332
        %v1334 = vrot.slane %v1326, %v1333
        %v1336 = vunpack.c.l.s4 1966171168
        %v1337 = vunpack.c.0.s8 %v1336
        %v1338 = vlaneseq
        %v1339 = vshrl.u32 %v1338, 7
        %v1340 = vsub.s32 %v1337, %v1339
        %v1341 = vrot.slane %v1327, %v1340
        %v1342 = vcombine.low %v1334, %v1341
        %v1344 = vmax.f32 %v1285, %v1342
        %1345 = vst [vmem:[#allocation2] sm:$0xff] %v1344
        %p1346 = scmp.eq.s32.totalorder %s29, 2
        // Predicated region
        $region57: #{tpu_custom_call.1} parent=47 // pred_check
          %p1347 = pneg %p1346
        $region58: #{tpu_custom_call.1} parent=47 // pred_check_branch
          %1349 = sbr.rel (%p1347) target = $region60
        $region59: #{tpu_custom_call.1} parent=47 // pred_region
          %v1350 = vld [vmem:[#allocation2] sm:$0xff]
          %1351 = vst [vmem:[%s325] sm:$0xff] %v1350
        $region60: #{tpu_custom_call.1} parent=47 // pred_fallthru
          _
        %s1352 = sand.u32 %s209, 1
        %s1353 = scalar_lea.sflag [#allocation5], %s1352
        %s1354 = sand.u32 %s209, 1
        %s1355 = smul.addr %s1354, 8
        %s1356 = scalar_lea.vmem [#allocation6], %s1355
        // Predicated region
        $region61: #{tpu_custom_call.1} parent=47 // pred_check
          %p1357 = pneg %p219
        $region62: #{tpu_custom_call.1} parent=47 // pred_check_branch
          %1359 = sbr.rel (%p1357) target = $region64
        $region63: #{tpu_custom_call.1} parent=47 // pred_region
          %s1361 = ssub.s32 128, 128
          %1362 = vsyncadd %s1353, %s1361
          %s1363 = smul.addr %s28, 8
          %s1364 = smul.addr %s27, 16
          %s1365 = sadd.s32 %s1363, %s1364
          %s1366 = smul.addr %s1365, 16
          %s1367 = scalar_lea.hbm %s7, %s1366
          %s1369 = sshll.u32 %s1356, 4
          %s1370 = int_to_ptr.vmem [resolvable:$true] %s1369
          %1372 = dma.vmem_to_hbm [thread:$0]  %s1370, 128, %s1367, %s1353
        $region64: #{tpu_custom_call.1} parent=47 // pred_fallthru
          _
      $region48: #{tpu_custom_call.1} parent=5 // pred_fallthru
        _
      %p1373 = scmp.le.s32.totalorder 2, %s17
      // Predicated region
      $region65: #{tpu_custom_call.1} parent=5 // pred_check
        %p1374 = pneg %p1373
      $region66: #{tpu_custom_call.1} parent=5 // pred_check_branch
        %1376 = sbr.rel (%p1374) target = $region68
      $region67: #{tpu_custom_call.1} parent=5 // pred_region
        %s1377 = ssub.s32 %s17, 2
        // Predicated region
        $region69: #{tpu_custom_call.1} parent=67 // pred_check
          %p1378 = pneg %p225
        $region70: #{tpu_custom_call.1} parent=67 // pred_check_branch
          %1380 = sbr.rel (%p1378) target = $region72
        $region71: #{tpu_custom_call.1} parent=67 // pred_region
          %s1381 = sand.u32 %s210, 1
          %s1382 = scalar_lea.sflag [#allocation5], %s1381
          %s1383 = sand.u32 %s210, 1
          %s1384 = smul.addr %s1383, 8
          %s1385 = scalar_lea.vmem [#allocation6], %s1384
          %1386 = dma.done %s1382, 128
        $region72: #{tpu_custom_call.1} parent=67 // pred_fallthru
          _
      $region68: #{tpu_custom_call.1} parent=5 // pred_fallthru
        _
    $region6: #{tpu_custom_call.1} parent=1 // loop_footer
      %s21 = sadd.s32 1, %s17
    $region7: #{tpu_custom_call.1} parent=1 // loop_footer_branch
      %16 = sbr.rel target = $region3
    $region8: #{tpu_custom_call.1} parent=1 // loop_exit
      _
    %1387 = vsyncpa [#allocation4], 1
    %s1388 = scalar_lea.sflag [#allocation4], 1
    %1389 = vsyncpa %s1388, 1
    %1390 = vsyncpa [#allocation5], 1
    %s1391 = scalar_lea.sflag [#allocation5], 1
    %1392 = vsyncpa %s1391, 1

</llo_original>
